<compile_context>
chip_gen: v7x
topology: tpu7x:2x2x1
jax: 0.10.0
libtpu: 0.0.40
codegen_flags: <defaults>
</compile_context>

<pallas_src>
import functools
import math

import jax
import jax.numpy as jnp
from jax import lax
from jax.experimental import pallas as pl
from jax.experimental.pallas import tpu as pltpu


def _round_up(x, m):
    return -(-x // m) * m


def _vmem_limit_bytes():
    """Per-generation VMEM budget (v7x only has 64 MiB physical)."""
    try:
        cap = int(pltpu.get_tpu_info().vmem_capacity_bytes)
    except Exception:
        cap = 64 * 1024 * 1024          # conservative fallback (v7x-sized)
    return int(min(96 * 1024 * 1024, cap * 3 // 4))


# ----------------------------------------------------------------------------
# Projection kernel: one wide all-head GEMM per row tile (x @ W.T).
# ----------------------------------------------------------------------------
def _proj_kernel(x_ref, w_ref, out_ref):
    # x_ref   : (1, TR, d_model)  bf16
    # w_ref   : (d_model, H*d_k)  bf16  (constant index_map -> VMEM-resident)
    # out_ref : (1, TR, H*d_k)    bf16
    out_ref[0] = jnp.dot(x_ref[0], w_ref[...],
                         preferred_element_type=jnp.float32
                         ).astype(out_ref.dtype)


def _project(x, w_all, tr, vmem_limit, compute_dtype):
    B, n, d_model = x.shape
    hdk = w_all.shape[1]
    return pl.pallas_call(
        _proj_kernel,
        out_shape=jax.ShapeDtypeStruct((B, n, hdk), compute_dtype),
        grid_spec=pltpu.PrefetchScalarGridSpec(
            num_scalar_prefetch=0,
            grid=(B, n // tr),
            in_specs=[
                pl.BlockSpec((1, tr, d_model), lambda b, r: (b, r, 0)),
                pl.BlockSpec((d_model, hdk), lambda b, r: (0, 0)),
            ],
            out_specs=pl.BlockSpec((1, tr, hdk), lambda b, r: (b, r, 0)),
        ),
        compiler_params=pltpu.CompilerParams(
            dimension_semantics=("parallel", "parallel"),
            vmem_limit_bytes=vmem_limit,
        ),
    )(x, w_all)


# ----------------------------------------------------------------------------
# Scores kernel: per-head (TQ,d_k) x (TK,d_k)^T matmuls, scale, mask.
# ----------------------------------------------------------------------------
def _scores_kernel(q_ref, k_ref, *rest, n_heads, d_k, scale, use_mask):
    # q_ref    : (1, TQ, H*d_k)  bf16   projected q rows
    # k_ref    : (1, TK, H*d_k)  bf16   projected k rows
    # mask_ref : (1, TQ, TK)     int8   (present only when use_mask)
    # out_ref  : (1, H, TQ, TK)  out_dtype
    if use_mask:
        mask_ref, out_ref = rest
    else:
        (out_ref,) = rest

    q_all = q_ref[0]
    k_all = k_ref[0]
    if use_mask:
        masked = mask_ref[0] != 0            # (TQ, TK), shared by all heads

    for h in range(n_heads):                 # static unroll; H is small
        qh = q_all[:, h * d_k:(h + 1) * d_k]     # (TQ, d_k) static lane slice
        kh = k_all[:, h * d_k:(h + 1) * d_k]     # (TK, d_k)
        # Contract the last dims directly -> no explicit k.T materialization.
        s = lax.dot_general(
            qh, kh,
            dimension_numbers=(((1,), (1,)), ((), ())),
            preferred_element_type=jnp.float32) * scale
        if use_mask:
            s = jnp.where(masked, jnp.float32(-1e9), s)
        out_ref[0, h] = s.astype(out_ref.dtype)


# ----------------------------------------------------------------------------
# Wrapper
# ----------------------------------------------------------------------------
def s_multi_head_attention(input_Q, input_K, attn_mask, W_Q, W_K, *,
                           n_heads, d_k, tq=256, tk=256,
                           compute_dtype=jnp.bfloat16,
                           out_dtype=jnp.float32):
    """Pallas equivalent of SMultiHeadAttention.forward.

    input_Q, input_K : (B, N, d_model) float32
    attn_mask        : (B, N, N) bool (True => masked) or None
    W_Q, W_K         : (d_k * n_heads, d_model)  -- nn.Linear weight layout
    out_dtype        : jnp.float32 (reference-matching) or jnp.bfloat16
                       (halves the dominant HBM score write)
    returns          : (B, n_heads, N, N) scores of dtype out_dtype
    """
    B, N, d_model = input_Q.shape
    hdk = n_heads * d_k
    assert tq % 32 == 0 and tk % 128 == 0, "tq mult of 32, tk mult of 128"

    # Clamp tiles for small N; pad N up only as far as needed so the grid
    # tiles evenly and output stores stay lane-dense.
    tq_eff = min(tq, _round_up(N, 32))
    tk_eff = min(tk, _round_up(N, 128))
    nq = _round_up(N, tq_eff)
    nk = _round_up(N, tk_eff)

    vmem_limit = _vmem_limit_bytes()

    xq = input_Q.astype(compute_dtype)
    xk = input_K.astype(compute_dtype)
    if nq != N:
        xq = jnp.pad(xq, ((0, 0), (0, nq - N), (0, 0)))
    if nk != N:
        xk = jnp.pad(xk, ((0, 0), (0, nk - N), (0, 0)))

    # nn.Linear computes x @ W.T; W.T's columns are head-major (h*d_k + j).
    wq_all = W_Q.T.astype(compute_dtype)     # (d_model, H*d_k)
    wk_all = W_K.T.astype(compute_dtype)     # (d_model, H*d_k)

    # Project each row exactly once (no per-(qi,kj) re-projection).
    q_all = _project(xq, wq_all, tq_eff, vmem_limit, compute_dtype)  # (B, nq, hdk)
    k_all = _project(xk, wk_all, tk_eff, vmem_limit, compute_dtype)  # (B, nk, hdk)

    use_mask = attn_mask is not None
    inputs = [q_all, k_all]
    in_specs = [
        pl.BlockSpec((1, tq_eff, hdk), lambda b, qi, kj: (b, qi, 0)),
        pl.BlockSpec((1, tk_eff, hdk), lambda b, qi, kj: (b, kj, 0)),
    ]
    if use_mask:
        mask_i8 = attn_mask.astype(jnp.int8)
        if nq != N or nk != N:
            mask_i8 = jnp.pad(mask_i8, ((0, 0), (0, nq - N), (0, nk - N)))
        inputs.append(mask_i8)
        in_specs.append(pl.BlockSpec((1, tq_eff, tk_eff),
                                     lambda b, qi, kj: (b, qi, kj)))

    kernel = functools.partial(
        _scores_kernel, n_heads=n_heads, d_k=d_k,
        scale=1.0 / math.sqrt(d_k), use_mask=use_mask)

    grid = (B, nq // tq_eff, nk // tk_eff)
    out = pl.pallas_call(
        kernel,
        out_shape=jax.ShapeDtypeStruct((B, n_heads, nq, nk), out_dtype),
        grid_spec=pltpu.PrefetchScalarGridSpec(
            num_scalar_prefetch=0,
            grid=grid,
            in_specs=in_specs,
            out_specs=pl.BlockSpec((1, n_heads, tq_eff, tk_eff),
                                   lambda b, qi, kj: (b, 0, qi, kj)),
        ),
        compiler_params=pltpu.CompilerParams(
            # no cross-step carry -> every axis is independent
            dimension_semantics=("parallel", "parallel", "parallel"),
            vmem_limit_bytes=vmem_limit,
        ),
    )(*inputs)

    # Drop padded rows/cols only when padding was actually applied.
    if nq != N or nk != N:
        out = out[:, :, :N, :N]
    return out


# ----------------------------------------------------------------------------
# Pure-JAX reference + self-test
# ----------------------------------------------------------------------------
def _reference(input_Q, input_K, attn_mask, W_Q, W_K, *, n_heads, d_k):
    B, N, d_model = input_Q.shape
    Q = (input_Q @ W_Q.T).reshape(B, N, n_heads, d_k).transpose(0, 2, 1, 3)
    K = (input_K @ W_K.T).reshape(B, N, n_heads, d_k).transpose(0, 2, 1, 3)
    scores = jnp.einsum("bhnd,bhmd->bhnm", Q, K) / math.sqrt(d_k)
    if attn_mask is not None:
        m = attn_mask[:, None, :, :]
        scores = jnp.where(m, jnp.float32(-1e9), scores)
    return scores


if __name__ == "__main__":
    # Small, deterministic example shapes.
    B, N, d_model = 2, 16, 32
    n_heads, d_k = 4, 8

    key = jax.random.PRNGKey(0)
    k1, k2, k3, k4, k5 = jax.random.split(key, 5)

    input_Q = jax.random.normal(k1, (B, N, d_model), dtype=jnp.float32)
    input_K = jax.random.normal(k2, (B, N, d_model), dtype=jnp.float32)
    # nn.Linear(d_model, d_k * n_heads, bias=False) weight: (d_k*n_heads, d_model)
    W_Q = jax.random.normal(k3, (d_k * n_heads, d_model), dtype=jnp.float32) * 0.1
    W_K = jax.random.normal(k4, (d_k * n_heads, d_model), dtype=jnp.float32) * 0.1
    attn_mask = jax.random.bernoulli(k5, p=0.25, shape=(B, N, N))  # True => masked

    # Masked path.
    out = s_multi_head_attention(
        input_Q, input_K, attn_mask, W_Q, W_K, n_heads=n_heads, d_k=d_k)
    out = jax.block_until_ready(out)
    ref = _reference(input_Q, input_K, attn_mask, W_Q, W_K,
                     n_heads=n_heads, d_k=d_k)
    assert out.shape == (B, n_heads, N, N)
    # bf16 Q/K with f32 accumulation -> loosened tolerance vs f32 reference.
    assert jnp.allclose(out, ref, atol=5e-2, rtol=5e-2), "mismatch vs reference"

    # No-mask specialization (mask input skipped entirely).
    out_nm = s_multi_head_attention(
        input_Q, input_K, None, W_Q, W_K, n_heads=n_heads, d_k=d_k)
    out_nm = jax.block_until_ready(out_nm)
    ref_nm = _reference(input_Q, input_K, None, W_Q, W_K,
                        n_heads=n_heads, d_k=d_k)
    assert jnp.allclose(out_nm, ref_nm, atol=5e-2, rtol=5e-2), "mismatch (no mask)"

    print("KERNEL_OK")
</pallas_src>

<mosaic_0001>
module attributes {stable_mosaic.version = 11 : i64} {
  func.func @_proj_kernel(%arg0: i32, %arg1: i32, %arg2: memref<1x32x32xbf16, #tpu.memory_space<vmem>>, %arg3: memref<32x32xbf16, #tpu.memory_space<vmem>>, %arg4: memref<1x32x32xbf16, #tpu.memory_space<vmem>>) attributes {dimension_semantics = [#tpu.dimension_semantics<parallel>, #tpu.dimension_semantics<parallel>], iteration_bounds = array<i64: 2, 1>, scalar_prefetch = 0 : i64, scratch_operands = 0 : i64, tpu.core_type = #tpu.core_type<tc>, window_params = [{transform_indices = @transform_0, window_bounds = array<i64: 1, 32, 32>}, {pipeline_mode = #tpu.pipeline_mode<synchronous>, transform_indices = @transform_1, window_bounds = array<i64: 32, 32>}, {transform_indices = @transform_2, window_bounds = array<i64: 1, 32, 32>}]} {
    %c0 = arith.constant 0 : index
    %c0_0 = arith.constant 0 : index
    %c0_1 = arith.constant 0 : index
    %0 = vector.load %arg2[%c0, %c0_0, %c0_1] : memref<1x32x32xbf16, #tpu.memory_space<vmem>>, vector<1x32x32xbf16>
    %1 = vector.shape_cast %0 : vector<1x32x32xbf16> to vector<32x32xbf16>
    %c0_2 = arith.constant 0 : index
    %c0_3 = arith.constant 0 : index
    %2 = vector.load %arg3[%c0_2, %c0_3] : memref<32x32xbf16, #tpu.memory_space<vmem>>, vector<32x32xbf16>
    %cst = arith.constant dense<0.000000e+00> : vector<32x32xf32>
    %3 = tpu.matmul %1, %2, %cst {dimension_numbers = #tpu.dot_dimension_numbers<[1], [0], [0], [1], [0, 0, 1, 1], [], []>} : vector<32x32xbf16>, vector<32x32xbf16>, vector<32x32xf32> -> vector<32x32xf32>
    %4 = arith.truncf %3 : vector<32x32xf32> to vector<32x32xbf16>
    %c0_4 = arith.constant 0 : index
    %c0_5 = arith.constant 0 : index
    %c0_6 = arith.constant 0 : index
    %5 = vector.load %arg4[%c0_4, %c0_5, %c0_6] : memref<1x32x32xbf16, #tpu.memory_space<vmem>>, vector<1x32x32xbf16>
    %6 = vector.shape_cast %5 : vector<1x32x32xbf16> to vector<32x32xbf16>
    %7 = vector.shape_cast %4 : vector<32x32xbf16> to vector<1x32x32xbf16>
    tpu.vector_store %arg4[%c0_4, %c0_5, %c0_6], %7 {strides = array<i32>} : memref<1x32x32xbf16, #tpu.memory_space<vmem>>, vector<1x32x32xbf16>,
    return
  }
  func.func @transform_0(%arg0: i32, %arg1: i32) -> (i32, i32, i32) {
    %c0_i32 = arith.constant 0 : i32
    %c0_i32_0 = arith.constant 0 : i32
    return %arg0, %arg1, %c0_i32 : i32, i32, i32
  }
  func.func @transform_1(%arg0: i32, %arg1: i32) -> (i32, i32) {
    %c0_i32 = arith.constant 0 : i32
    %c0_i32_0 = arith.constant 0 : i32
    %c0_i32_1 = arith.constant 0 : i32
    return %c0_i32, %c0_i32_0 : i32, i32
  }
  func.func @transform_2(%arg0: i32, %arg1: i32) -> (i32, i32, i32) {
    %c0_i32 = arith.constant 0 : i32
    %c0_i32_0 = arith.constant 0 : i32
    return %arg0, %arg1, %c0_i32 : i32, i32, i32
  }
}

</mosaic_0001>

<llo_original>
// kernel: tpu_custom_call.1
$region0: #{tpu_custom_call.1}
  #allocation0 [shape = 'u32[]', space=smem, size = 0x4, offset = 0x4, fixed_abs, tag = 'smem constant byte address 0x4 - core index']
  #allocation1 [shape = 'u32[144,128]{1,0:T(1,128)}', space=vmem, size = 0x12000, scoped, tag = 'internal scratch']
  %s0 = inlined_call_operand.hbm [shape: bf16[2,32,32], index: 0, kind: input, shape index: {}]
  %s1 = inlined_call_operand.hbm [shape: bf16[32,32], index: 1, kind: input, shape index: {}]
  %s2 = inlined_call_operand.hbm [shape: bf16[2,32,32], index: 2, kind: output, shape index: {}]
  %s3 = sld [smem:[#allocation0]]
  $region49: #{tpu_custom_call.1} parent=0
    _
  %s5 = ssub.s32 1, %s3
  %s6 = scalar_select 0, %s5, %s3
  $region1: #{tpu_custom_call.1} parent=0
    #allocation2 [shape = 'u8[16384]{0}', space=vmem, size = 0x4000, scoped, tag = 'input window, operand 0']
    #allocation3 [shape = 's32[2]{0}', space=sflag, size = 0x8, scoped, tag = 'scoped memory for tpu_custom_call.1']
    #allocation4 [shape = 's32[2]{0}', space=sflag, size = 0x8, scoped, tag = 'scoped memory for tpu_custom_call.1']
    #allocation5 [shape = 'u8[8192]{0}', space=vmem, size = 0x2000, scoped, tag = 'input window, operand 1, single buffered']
    #allocation6 [shape = 's32[1]{0}', space=sflag, size = 0x4, scoped, tag = 'scoped memory for tpu_custom_call.1']
    #allocation7 [shape = 'u8[16384]{0}', space=vmem, size = 0x4000, scoped, tag = 'output window, operand 0']
    %7 = vsyncpa [#allocation3], 0
    %s8 = scalar_lea.sflag [#allocation3], 1
    %9 = vsyncpa %s8, 0
    %10 = vsyncpa [#allocation6], 0
    %11 = vsyncpa [#allocation4], 0
    %s12 = scalar_lea.sflag [#allocation4], 1
    %13 = vsyncpa %s12, 0
    loop: start=0, step=1, limit=4
    $region2: #{tpu_custom_call.1} parent=1 // loop_pre_header
      _
    $region3: #{tpu_custom_call.1} parent=1 // loop_header
      %s15 = sphi 0, %s19
      %p16 = scmp.ge.s32.totalorder %s15, 4
      %s22 = sphi 0, %s34
      %s23 = sphi 0, %s30
      %s24 = sphi 0, %s22
      %s25 = sphi 0, %s23
      %s26 = sphi 0, %s24
      %s27 = sphi 0, %s25
      %s39 = sphi 0, %s41
      %s42 = sphi 0, %s39
      %s43 = sphi 0, %s42
      %s59 = sphi 0, %s43
      %s63 = sphi 0, %s63
      %s65 = sphi 0, %s63
      %s66 = sphi 0, %s65
      %s80 = sphi 0, %s66
      %s88 = sphi 0, %s90
      %s91 = sphi 0, %s88
      %s92 = sphi 0, %s91
      %s108 = sphi 0, %s92
    $region4: #{tpu_custom_call.1} parent=1 // loop_header_branch
      %18 = sbr.rel (%p16) target = $region8
    $region5: #{tpu_custom_call.1} parent=1 // loop_body
      %s20 = ssub.s32 %s15, 1
      %s21 = ssub.s32 %s15, 2
      %s28 = sadd.s32 1, %s23
      %p29 = scmp.ge.s32.totalorder %s28, 1
      %s30 = scalar_select %p29, 0, %s28
      %s31 = sadd.s32 1, %s22
      %s32 = scalar_select %p29, %s31, %s22
      %p33 = scmp.ge.s32.totalorder %s32, 2
      %s34 = scalar_select %p33, 0, %s32
      %s35 = ssub.s32 %s22, %s34
      %s36 = ssub.s32 %s23, %s30
      %s37 = sor.u32 %s35, %s36
      %p38 = scmp.eq.s32.totalorder %s37, 0
      %s40 = sadd.s32 %s39, 1
      %s41 = scalar_select %p38, %s39, %s40
      %p44 = pneg %p38
      %p45 = scmp.eq.s32.totalorder %s15, 1
      %p46 = por %p44, %p45
      %p47 = scmp.ne.s32.totalorder %s39, %s42
      %p48 = scmp.eq.s32.totalorder %s15, 0
      %p49 = por %p47, %p48
      %p50 = scmp.ne.s32.totalorder %s39, %s42
      %p51 = scmp.eq.s32.totalorder %s20, 1
      %p52 = por %p50, %p51
      %p53 = scmp.ne.s32.totalorder %s42, %s43
      %p54 = scmp.eq.s32.totalorder %s20, 0
      %p55 = por %p53, %p54
      %p56 = scmp.ne.s32.totalorder %s42, %s43
      %p57 = scmp.eq.s32.totalorder %s21, 1
      %p58 = por %p56, %p57
      %p60 = scmp.ne.s32.totalorder %s43, %s59
      %p61 = scmp.eq.s32.totalorder %s21, 0
      %p62 = por %p60, %p61
      %s64 = sadd.s32 %s63, 1
      %p67 = scmp.eq.s32.totalorder %s15, 1
      %p68 = scmp.ne.s32.totalorder %s63, %s65
      %p69 = scmp.eq.s32.totalorder %s15, 0
      %p70 = por %p68, %p69
      %p71 = scmp.ne.s32.totalorder %s63, %s65
      %p72 = scmp.eq.s32.totalorder %s20, 1
      %p73 = por %p71, %p72
      %p74 = scmp.ne.s32.totalorder %s65, %s66
      %p75 = scmp.eq.s32.totalorder %s20, 0
      %p76 = por %p74, %p75
      %p77 = scmp.ne.s32.totalorder %s65, %s66
      %p78 = scmp.eq.s32.totalorder %s21, 1
      %p79 = por %p77, %p78
      %p81 = scmp.ne.s32.totalorder %s66, %s80
      %p82 = scmp.eq.s32.totalorder %s21, 0
      %p83 = por %p81, %p82
      %s84 = ssub.s32 %s22, %s34
      %s85 = ssub.s32 %s23, %s30
      %s86 = sor.u32 %s84, %s85
      %p87 = scmp.eq.s32.totalorder %s86, 0
      %s89 = sadd.s32 %s88, 1
      %s90 = scalar_select %p87, %s88, %s89
      %p93 = pneg %p87
      %p94 = scmp.eq.s32.totalorder %s15, 1
      %p95 = por %p93, %p94
      %p96 = scmp.ne.s32.totalorder %s88, %s91
      %p97 = scmp.eq.s32.totalorder %s15, 0
      %p98 = por %p96, %p97
      %p99 = scmp.ne.s32.totalorder %s88, %s91
      %p100 = scmp.eq.s32.totalorder %s20, 1
      %p101 = por %p99, %p100
      %p102 = scmp.ne.s32.totalorder %s91, %s92
      %p103 = scmp.eq.s32.totalorder %s20, 0
      %p104 = por %p102, %p103
      %p105 = scmp.ne.s32.totalorder %s91, %s92
      %p106 = scmp.eq.s32.totalorder %s21, 1
      %p107 = por %p105, %p106
      %p109 = scmp.ne.s32.totalorder %s92, %s108
      %p110 = scmp.eq.s32.totalorder %s21, 0
      %p111 = por %p109, %p110
      %p112 = scmp.le.s32.totalorder 1, %s15
      %p113 = scmp.lt.s32.totalorder %s15, 3
      %p114 = pnand %p112, %p113
      %p115 = pneg %p114
      // Predicated region
      $region9: #{tpu_custom_call.1} parent=5 // pred_check
        _
      $region10: #{tpu_custom_call.1} parent=5 // pred_check_branch
        %117 = sbr.rel (%p114) target = $region12
      $region11: #{tpu_custom_call.1} parent=5 // pred_region
        %s118 = ssub.s32 %s15, 1
        // Predicated region
        $region13: #{tpu_custom_call.1} parent=11 // pred_check
          %p119 = pneg %p76
        $region14: #{tpu_custom_call.1} parent=11 // pred_check_branch
          %121 = sbr.rel (%p119) target = $region16
        $region15: #{tpu_custom_call.1} parent=11 // pred_region
          %s123 = ssub.s32 256, 256
          %124 = vsyncadd [#allocation6], %s123
          %s125 = sshll.u32 [#allocation5], 4
          %s126 = int_to_ptr.vmem [resolvable:$true] %s125
          %131 = dma.hbm_to_vmem [thread:$0]  %s1, 256, %s126, [#allocation6], 64, 64, 4
        $region16: #{tpu_custom_call.1} parent=11 // pred_fallthru
          _
      $region12: #{tpu_custom_call.1} parent=5 // pred_fallthru
        _
      %p132 = scmp.lt.s32.totalorder %s15, 2
      // Predicated region
      $region17: #{tpu_custom_call.1} parent=5 // pred_check
        %p133 = pneg %p132
      $region18: #{tpu_custom_call.1} parent=5 // pred_check_branch
        %135 = sbr.rel (%p133) target = $region20
      $region19: #{tpu_custom_call.1} parent=5 // pred_region
        // Predicated region
        $region21: #{tpu_custom_call.1} parent=19 // pred_check
          %p136 = pneg %p49
        $region22: #{tpu_custom_call.1} parent=19 // pred_check_branch
          %138 = sbr.rel (%p136) target = $region24
        $region23: #{tpu_custom_call.1} parent=19 // pred_region
          %s139 = sand.u32 %s39, 1
          %s140 = scalar_lea.sflag [#allocation3], %s139
          %s141 = sand.u32 %s39, 1
          %s142 = smul.addr %s141, 16
          %s143 = scalar_lea.vmem [#allocation2], %s142
          %s144 = smul.u32 4, %s23
          %s146 = ssub.s32 256, 256
          %147 = vsyncadd %s140, %s146
          %s148 = smul.addr %s22, 4
          %s149 = sadd.s32 %s144, %s148
          %s150 = smul.addr %s149, 64
          %s151 = scalar_lea.hbm %s0, %s150
          %s152 = sshll.u32 %s143, 4
          %s153 = int_to_ptr.vmem [resolvable:$true] %s152
          %158 = dma.hbm_to_vmem [thread:$0]  %s151, 256, %s153, %s140, 64, 64, 4
        $region24: #{tpu_custom_call.1} parent=19 // pred_fallthru
          _
      $region20: #{tpu_custom_call.1} parent=5 // pred_fallthru
        _
      %p159 = scmp.le.s32.totalorder 1, %s15
      %p160 = scmp.lt.s32.totalorder %s15, 3
      %p161 = pnand %p159, %p160
      %p162 = pneg %p161
      // Predicated region
      $region25: #{tpu_custom_call.1} parent=5 // pred_check
        _
      $region26: #{tpu_custom_call.1} parent=5 // pred_check_branch
        %164 = sbr.rel (%p161) target = $region28
      $region27: #{tpu_custom_call.1} parent=5 // pred_region
        %s165 = ssub.s32 %s15, 1
        %s166 = sand.u32 %s42, 1
        %s167 = scalar_lea.sflag [#allocation3], %s166
        %s168 = sand.u32 %s42, 1
        %s169 = smul.addr %s168, 16
        %s170 = scalar_lea.vmem [#allocation2], %s169
        // Predicated region
        $region29: #{tpu_custom_call.1} parent=27 // pred_check
          %p171 = pneg %p55
        $region30: #{tpu_custom_call.1} parent=27 // pred_check_branch
          %173 = sbr.rel (%p171) target = $region32
        $region31: #{tpu_custom_call.1} parent=27 // pred_region
          %174 = dma.done %s167, 256
        $region32: #{tpu_custom_call.1} parent=27 // pred_fallthru
          _
        // Predicated region
        $region33: #{tpu_custom_call.1} parent=27 // pred_check
          %p175 = pneg %p76
        $region34: #{tpu_custom_call.1} parent=27 // pred_check_branch
          %177 = sbr.rel (%p175) target = $region36
        $region35: #{tpu_custom_call.1} parent=27 // pred_region
          %178 = dma.done [#allocation6], 256
        $region36: #{tpu_custom_call.1} parent=27 // pred_fallthru
          _
        %s179 = sand.u32 %s42, 1
        %s180 = scalar_lea.sflag [#allocation3], %s179
        %s181 = sand.u32 %s42, 1
        %s182 = smul.addr %s181, 16
        %s183 = scalar_lea.vmem [#allocation2], %s182
        %p184 = pneg %p55
        %p185 = pneg %p52
        %p186 = pneg %p76
        %p187 = pneg %p73
        %p188 = pneg %p104
        %p189 = pneg %p101
        %s190 = sand.u32 %s91, 1
        %s191 = scalar_lea.sflag [#allocation4], %s190
        %s192 = sand.u32 %s91, 1
        %s193 = smul.addr %s192, 16
        %s194 = scalar_lea.vmem [#allocation7], %s193
        %s195 = smul.u32 4, %s25
        %s196 = smul.u32 4, %s25
        %v198 = vld [vmem:[%s170] sm:$0xf]
        %v199 = vld [vmem:[%s170 + $0x4] sm:$0xf]
        %v200 = vld [vmem:[%s170 + $0x8] sm:$0xf]
        %v201 = vld [vmem:[%s170 + $0xc] sm:$0xf]
        %v202 = vld [vmem:[#allocation5] sm:$0xf]
        %v203 = vld [vmem:[#allocation5 + $0x4] sm:$0xf]
        %v204 = vld [vmem:[#allocation5 + $0x8] sm:$0xf]
        %v205 = vld [vmem:[#allocation5 + $0xc] sm:$0xf]
        %v210 = vunpack.c.l.b16 %v198
        %v211 = vunpack.c.l.b16 %v199
        %v212 = vunpack.c.l.b16 %v200
        %v213 = vunpack.c.l.b16 %v201
        %v214 = vpack.c.b16 %v211, %v210
        %v215 = vpack.c.b16 %v213, %v212
        %v220 = vunpack.c.l.b16 %v202
        %v221 = vunpack.c.l.b16 %v203
        %v222 = vunpack.c.l.b16 %v204
        %v223 = vunpack.c.l.b16 %v205
        %v224 = vpack.c.b16 %v221, %v220
        %v225 = vpack.c.b16 %v223, %v222
        %vm228 = vcmask 261120
        %v230 = vsel %vm228, %v214, 0
        %v233 = vsel %vm228, %v215, 0
        %235 = vmatprep.subr.bf16.mxu0 0
        %236 = vmatpush1.bf16.msra.mxu0 %v224
        %237 = vmatprep.subr.bf16.mxu0 0
        %238 = vmatpush1.bf16.msra.mxu0 %v225
        %239 = vmatprep.subr.bf16.mxu0 0
        %240 = vmatpush1.bf16.msra.mxu0 0
        %241 = vmatprep.subr.bf16.mxu0 0
        %242 = vmatpush1.bf16.msra.mxu0 0
        %243 = vmatprep.subr.bf16.mxu0 0
        %244 = vmatpush1.bf16.msra.mxu0 0
        %245 = vmatprep.subr.bf16.mxu0 0
        %246 = vmatpush1.bf16.msra.mxu0 0
        %247 = vmatprep.subr.bf16.mxu0 0
        %248 = vmatpush1.bf16.msra.mxu0 0
        %249 = vmatprep.subr.bf16.mxu0 0
        %250 = vmatpush1.bf16.msra.mxu0 0
        %251 = vmatprep.subr.bf16.mxu0 0
        %252 = vmatpush1.bf16.msra.mxu0 0
        %253 = vmatprep.subr.bf16.mxu0 0
        %254 = vmatpush1.bf16.msra.mxu0 0
        %255 = vmatprep.subr.bf16.mxu0 0
        %256 = vmatpush1.bf16.msra.mxu0 0
        %257 = vmatprep.subr.bf16.mxu0 0
        %258 = vmatpush1.bf16.msra.mxu0 0
        %259 = vmatprep.subr.bf16.mxu0 0
        %260 = vmatpush1.bf16.msra.mxu0 0
        %261 = vmatprep.subr.bf16.mxu0 0
        %262 = vmatpush1.bf16.msra.mxu0 0
        %263 = vmatprep.subr.bf16.mxu0 0
        %264 = vmatpush1.bf16.msra.mxu0 0
        %265 = vmatprep.subr.bf16.mxu0 0
        %266 = vmatpush1.bf16.msra.mxu0 0
        %267 = vmatprep.mubr.bf16.mxu0 0
        %268 = vmatmul.mubr.bf16.gmra.mrb[0].mxu0 %v230
        %v269 = vpop.f32.mrb[0].mxu0
        %v270 = vadd.f32 0.0, %v269
        %v271 = vpop.f32.mrb[0].mxu0
        %v272 = vpop.f32.mrb[0].mxu0
        %v273 = vadd.f32 0.0, %v272
        %v274 = vpop.f32.mrb[0].mxu0
        %275 = vmatprep.mubr.bf16.mxu0 0
        %276 = vmatmul.mubr.bf16.gmra.mrb[0].mxu0 %v233
        %v277 = vpop.f32.mrb[0].mxu0
        %v278 = vadd.f32 0.0, %v277
        %v279 = vpop.f32.mrb[0].mxu0
        %v280 = vpop.f32.mrb[0].mxu0
        %v281 = vadd.f32 0.0, %v280
        %v282 = vpop.f32.mrb[0].mxu0
        %283 = vdwg.mxu0
        %v284 = vpack.c.bf16 %v273, %v270
        %v285 = vpack.c.bf16 %v281, %v278
        %v288 = vunpack.c.l.b16 %v284
        %v289 = vunpack.c.h.b16 %v284
        %v290 = vunpack.c.l.b16 %v285
        %v291 = vunpack.c.h.b16 %v285
        %v292 = vpack.c.b16 %v288, %v288
        %v293 = vpack.c.b16 %v289, %v289
        %v294 = vpack.c.b16 %v290, %v290
        %v295 = vpack.c.b16 %v291, %v291
        %vm300 = vcmask 257024
        %301 = vst.msk [vmem:[%s194] sm:$0xf] %vm300, %v292
        %302 = vst.msk [vmem:[%s194 + $0x4] sm:$0xf] %vm300, %v293
        %303 = vst.msk [vmem:[%s194 + $0x8] sm:$0xf] %vm300, %v294
        %304 = vst.msk [vmem:[%s194 + $0xc] sm:$0xf] %vm300, %v295
        %s305 = sand.u32 %s91, 1
        %s306 = scalar_lea.sflag [#allocation4], %s305
        %s307 = sand.u32 %s91, 1
        %s308 = smul.addr %s307, 16
        %s309 = scalar_lea.vmem [#allocation7], %s308
        // Predicated region
        $region37: #{tpu_custom_call.1} parent=27 // pred_check
          %p310 = pneg %p101
        $region38: #{tpu_custom_call.1} parent=27 // pred_check_branch
          %312 = sbr.rel (%p310) target = $region40
        $region39: #{tpu_custom_call.1} parent=27 // pred_region
          %s313 = smul.u32 4, %s25
          %s315 = ssub.s32 256, 256
          %316 = vsyncadd %s306, %s315
          %s317 = smul.addr %s24, 4
          %s318 = sadd.s32 %s313, %s317
          %s319 = smul.addr %s318, 64
          %s320 = scalar_lea.hbm %s2, %s319
          %s321 = sshll.u32 %s309, 4
          %s322 = int_to_ptr.vmem [resolvable:$true] %s321
          %327 = dma.vmem_to_hbm [thread:$0]  %s322, 256, %s320, %s306, 64, 64, 4
        $region40: #{tpu_custom_call.1} parent=27 // pred_fallthru
          _
      $region28: #{tpu_custom_call.1} parent=5 // pred_fallthru
        _
      %p328 = scmp.le.s32.totalorder 2, %s15
      // Predicated region
      $region41: #{tpu_custom_call.1} parent=5 // pred_check
        %p329 = pneg %p328
      $region42: #{tpu_custom_call.1} parent=5 // pred_check_branch
        %331 = sbr.rel (%p329) target = $region44
      $region43: #{tpu_custom_call.1} parent=5 // pred_region
        %s332 = ssub.s32 %s15, 2
        // Predicated region
        $region45: #{tpu_custom_call.1} parent=43 // pred_check
          %p333 = pneg %p107
        $region46: #{tpu_custom_call.1} parent=43 // pred_check_branch
          %335 = sbr.rel (%p333) target = $region48
        $region47: #{tpu_custom_call.1} parent=43 // pred_region
          %s336 = sand.u32 %s92, 1
          %s337 = scalar_lea.sflag [#allocation4], %s336
          %s338 = sand.u32 %s92, 1
          %s339 = smul.addr %s338, 16
          %s340 = scalar_lea.vmem [#allocation7], %s339
          %341 = dma.done %s337, 256
        $region48: #{tpu_custom_call.1} parent=43 // pred_fallthru
          _
      $region44: #{tpu_custom_call.1} parent=5 // pred_fallthru
        _
    $region6: #{tpu_custom_call.1} parent=1 // loop_footer
      %s19 = sadd.s32 1, %s15
    $region7: #{tpu_custom_call.1} parent=1 // loop_footer_branch
      %14 = sbr.rel target = $region3
    $region8: #{tpu_custom_call.1} parent=1 // loop_exit
      _
    %342 = vsyncpa [#allocation3], 1
    %s343 = scalar_lea.sflag [#allocation3], 1
    %344 = vsyncpa %s343, 1
    %345 = vsyncpa [#allocation6], 1
    %346 = vsyncpa [#allocation4], 1
    %s347 = scalar_lea.sflag [#allocation4], 1
    %348 = vsyncpa %s347, 1

</llo_original>
